<compile_context>
chip_gen: v6e
topology: v6e:2x2x1
jax: 0.10.0
libtpu: 0.0.40
codegen_flags: <defaults>
</compile_context>

<pallas_src>
import jax
import jax.numpy as jnp
from jax.experimental import pallas as pl
from jax.experimental.pallas import tpu as pltpu


def _round_up(x, m):
    return ((x + m - 1) // m) * m


def _choose_bm(B, bm_target):
    """Pick batch-tile rows.

    * tiny batches: one tile, rows padded to a sublane multiple of 8;
    * otherwise: >= 2 tiles (even count when possible) so v7x's two TensorCores both get
      work, sized to ceil(B / n_tiles) rounded to a 128-lane multiple so the lane-dense
      output blocks stay unmasked and the tail tile is not mostly padding.
    """
    if B <= 256:
        return _round_up(B, 8)
    n = max(2, pl.cdiv(B, bm_target))
    if n % 2:
        n += 1
    return _round_up(pl.cdiv(B, n), 128)


# ----------------------------- Pallas kernel ---------------------------------
def qfunc_kernel(obs_ref, act_ref, w1o_ref, w1a_ref, b1_ref,
                 w2_ref, b2_ref, w3_ref, b3_ref, o_ref):
    """Fused 3-layer MLP: (Linear + ReLU) x 2, then Linear(., 1) (Identity out act)."""
    # Layer 1: split-input matmul == concat([obs, act], -1) @ W1 + b1.
    # Operands may be bf16; accumulation + bias + ReLU stay in f32.
    h = (jnp.dot(obs_ref[...], w1o_ref[...], preferred_element_type=jnp.float32)
         + jnp.dot(act_ref[...], w1a_ref[...], preferred_element_type=jnp.float32)
         + b1_ref[...])
    h = jnp.maximum(h, 0.0)                                       # ReLU (f32 VPU)

    # Layer 2.
    h = (jnp.dot(h.astype(w2_ref.dtype), w2_ref[...],
                 preferred_element_type=jnp.float32) + b2_ref[...])
    h = jnp.maximum(h, 0.0)                                       # ReLU (f32 VPU)

    # Layer 3 (h2 -> 1): contract on h's LAST dim via dot_general so Mosaic can consume h
    # as a transposed RHS (no explicit (bm, h2) transpose materialized); result is a
    # lane-dense (1, bm) row.
    q = jax.lax.dot_general(
        w3_ref[...], h.astype(w3_ref.dtype),
        dimension_numbers=(((1,), (1,)), ((), ())),
        preferred_element_type=jnp.float32)
    o_ref[...] = (q + b3_ref[0]).astype(o_ref.dtype)              # output activation = Identity


# ------------------------------- wrapper --------------------------------------
def mlp_q_forward(obs, act, params, *, bm=4096, use_bf16=True):
    """obs: (B, obs_dim), act: (B, act_dim) -> q: (B,)  (last dim squeezed)."""
    (w1, b1), (w2, b2), (w3, b3) = params
    B, obs_dim = obs.shape
    act_dim = act.shape[1]
    h1 = w1.shape[1]
    h2 = w2.shape[1]

    in_dtype = jnp.bfloat16 if use_bf16 else jnp.float32

    # Batch tiling (see _choose_bm); ragged batches are zero-padded, padded rows are
    # discarded by the final slice (never reduce over q_row before slicing).
    bm_eff = _choose_bm(B, bm)
    B_pad = _round_up(B, bm_eff)
    num_tiles = B_pad // bm_eff

    obs = obs.astype(in_dtype)
    act = act.astype(in_dtype)
    if B_pad != B:
        obs = jnp.pad(obs, ((0, B_pad - B), (0, 0)))
        act = jnp.pad(act, ((0, B_pad - B), (0, 0)))

    # Tiny parameter reshuffles outside the hot path: split W1, W3 as a (1, h2) row,
    # biases kept f32, b3 flattened to an SMEM scalar.
    w1o = w1[:obs_dim].astype(in_dtype)              # (obs_dim, h1)
    w1a = w1[obs_dim:].astype(in_dtype)              # (act_dim, h1)
    b1f = b1.astype(jnp.float32).reshape(1, h1)      # (1, h1)
    w2f = w2.astype(in_dtype)                        # (h1, h2)
    b2f = b2.astype(jnp.float32).reshape(1, h2)      # (1, h2)
    w3r = w3.astype(in_dtype).reshape(1, h2)         # (1, h2) == W3^T
    b3s = b3.astype(jnp.float32).reshape(1)          # SMEM scalar

    q_row = pl.pallas_call(
        qfunc_kernel,
        out_shape=jax.ShapeDtypeStruct((1, B_pad), jnp.float32),
        grid_spec=pltpu.PrefetchScalarGridSpec(
            num_scalar_prefetch=0,
            grid=(num_tiles,),
            in_specs=[
                pl.BlockSpec((bm_eff, obs_dim), lambda i: (i, 0)),   # obs batch tile
                pl.BlockSpec((bm_eff, act_dim), lambda i: (i, 0)),   # act batch tile
                pl.BlockSpec((obs_dim, h1), lambda i: (0, 0)),       # W1[:obs_dim] (resident)
                pl.BlockSpec((act_dim, h1), lambda i: (0, 0)),       # W1[obs_dim:] (resident)
                pl.BlockSpec((1, h1), lambda i: (0, 0)),             # b1
                pl.BlockSpec((h1, h2), lambda i: (0, 0)),            # W2
                pl.BlockSpec((1, h2), lambda i: (0, 0)),             # b2
                pl.BlockSpec((1, h2), lambda i: (0, 0)),             # W3^T row
                pl.BlockSpec(memory_space=pltpu.MemorySpace.SMEM),   # b3 scalar
            ],
            out_specs=pl.BlockSpec((1, bm_eff), lambda i: (0, i)),   # lane-dense output row
        ),
        compiler_params=pltpu.CompilerParams(
            dimension_semantics=("parallel",),       # shards batch tiles across v7x TCs
            vmem_limit_bytes=64 * 1024 * 1024),      # headroom for large-bm temporaries
    )(obs, act, w1o, w1a, b1f, w2f, b2f, w3r, b3s)
    return q_row[0, :B]                              # torch.squeeze(q, -1)


# ----------------------- deterministic parameter init -------------------------
def init_linear(key, fan_in, fan_out):
    """Kaiming-uniform weights (matches initialize_weights()); torch-default bias init."""
    kw, kb = jax.random.split(key)
    w_bound = (6.0 / fan_in) ** 0.5
    b_bound = 1.0 / (fan_in ** 0.5)
    w = jax.random.uniform(kw, (fan_in, fan_out), jnp.float32, -w_bound, w_bound)
    b = jax.random.uniform(kb, (1, fan_out), jnp.float32, -b_bound, b_bound)
    return w, b


def init_mlp_q(key, obs_dim, act_dim, hidden_sizes):
    sizes = [obs_dim + act_dim] + list(hidden_sizes) + [1]
    params = []
    for j in range(len(sizes) - 1):
        key, sub = jax.random.split(key)
        params.append(init_linear(sub, sizes[j], sizes[j + 1]))
    return params


# ------------------------------ reference -------------------------------------
def mlp_q_reference(obs, act, params, *, operand_dtype=jnp.float32):
    """Pure-JAX reference.  operand_dtype=bf16 emulates the kernel's bf16-operand /
    f32-accumulate numerics; f32 is the exact PyTorch-equivalent reference."""
    (w1, b1), (w2, b2), (w3, b3) = params
    x = jnp.concatenate([obs, act], axis=-1).astype(jnp.float32)

    def dense(x, w, b):
        y = jnp.dot(x.astype(operand_dtype), w.astype(operand_dtype),
                    preferred_element_type=jnp.float32)
        return y + b.astype(jnp.float32)

    h = jnp.maximum(dense(x, w1, b1), 0.0)
    h = jnp.maximum(dense(h, w2, b2), 0.0)
    q = dense(h, w3, b3)
    return jnp.squeeze(q, -1)


if __name__ == "__main__":
    # Small shapes implied by the module: obs_dim=16, act_dim=8, hidden=(32, 32).
    obs_dim, act_dim = 16, 8
    hidden_sizes = (32, 32)

    key = jax.random.PRNGKey(0)
    k_params, k1, k2, k3, k4, k5, k6 = jax.random.split(key, 7)
    params = init_mlp_q(k_params, obs_dim, act_dim, hidden_sizes)

    # 1) Tiny batch, f32 operand path (single-tile), tight tolerance.
    obs = jax.random.normal(k1, (8, obs_dim), jnp.float32)
    act = jax.random.normal(k2, (8, act_dim), jnp.float32)
    q = jax.block_until_ready(mlp_q_forward(obs, act, params, use_bf16=False))
    q_ref = mlp_q_reference(obs, act, params)
    assert q.shape == (8,), q.shape
    assert jnp.allclose(q, q_ref, atol=1e-5, rtol=1e-5), (q, q_ref)

    # 2) Ragged multi-tile batch with small bm target (exercises zero-padding and >= 2
    #    "parallel" grid steps).  bf16 streams: compare tightly against a bf16-operand /
    #    f32-accumulate reference, loosely against the pure-f32 reference.
    obs2 = jax.random.normal(k3, (300, obs_dim), jnp.float32)
    act2 = jax.random.normal(k4, (300, act_dim), jnp.float32)
    q2 = jax.block_until_ready(mlp_q_forward(obs2, act2, params, bm=128))
    q2_bf = mlp_q_reference(obs2, act2, params, operand_dtype=jnp.bfloat16)
    q2_f32 = mlp_q_reference(obs2, act2, params)
    assert q2.shape == (300,), q2.shape
    assert jnp.allclose(q2, q2_bf, atol=1e-4, rtol=1e-4), (q2, q2_bf)
    assert jnp.allclose(q2, q2_f32, atol=1e-1, rtol=1e-1), (q2, q2_f32)

    # 3) Mid-size batch with the default large bm target: splits into 2 even tiles so
    #    both v7x TensorCores get work; ragged tail is padded inside the second tile.
    obs3 = jax.random.normal(k5, (2053, obs_dim), jnp.float32)
    act3 = jax.random.normal(k6, (2053, act_dim), jnp.float32)
    q3 = jax.block_until_ready(mlp_q_forward(obs3, act3, params))
    q3_bf = mlp_q_reference(obs3, act3, params, operand_dtype=jnp.bfloat16)
    assert q3.shape == (2053,), q3.shape
    assert jnp.allclose(q3, q3_bf, atol=1e-4, rtol=1e-4), (q3, q3_bf)

    print("KERNEL_OK")
</pallas_src>

<mosaic_0001>
module attributes {stable_mosaic.version = 11 : i64} {
  func.func @qfunc_kernel(%arg0: i32, %arg1: memref<8x16xf32, #tpu.memory_space<vmem>>, %arg2: memref<8x8xf32, #tpu.memory_space<vmem>>, %arg3: memref<16x32xf32, #tpu.memory_space<vmem>>, %arg4: memref<8x32xf32, #tpu.memory_space<vmem>>, %arg5: memref<1x32xf32, #tpu.memory_space<vmem>>, %arg6: memref<32x32xf32, #tpu.memory_space<vmem>>, %arg7: memref<1x32xf32, #tpu.memory_space<vmem>>, %arg8: memref<1x32xf32, #tpu.memory_space<vmem>>, %arg9: memref<1xf32, #tpu.memory_space<smem>>, %arg10: memref<1x8xf32, #tpu.memory_space<vmem>>) attributes {dimension_semantics = [#tpu.dimension_semantics<parallel>], iteration_bounds = array<i64: 1>, scalar_prefetch = 0 : i64, scratch_operands = 0 : i64, tpu.core_type = #tpu.core_type<tc>, window_params = [{transform_indices = @transform_0, window_bounds = array<i64: 8, 16>}, {transform_indices = @transform_1, window_bounds = array<i64: 8, 8>}, {pipeline_mode = #tpu.pipeline_mode<synchronous>, transform_indices = @transform_2, window_bounds = array<i64: 16, 32>}, {pipeline_mode = #tpu.pipeline_mode<synchronous>, transform_indices = @transform_3, window_bounds = array<i64: 8, 32>}, {pipeline_mode = #tpu.pipeline_mode<synchronous>, transform_indices = @transform_4, window_bounds = array<i64: 1, 32>}, {pipeline_mode = #tpu.pipeline_mode<synchronous>, transform_indices = @transform_5, window_bounds = array<i64: 32, 32>}, {pipeline_mode = #tpu.pipeline_mode<synchronous>, transform_indices = @transform_6, window_bounds = array<i64: 1, 32>}, {pipeline_mode = #tpu.pipeline_mode<synchronous>, transform_indices = @transform_7, window_bounds = array<i64: 1, 32>}, {transform_indices = @transform_8, window_bounds = array<i64: 1>}, {transform_indices = @transform_9, window_bounds = array<i64: 1, 8>}]} {
    %c0 = arith.constant 0 : index
    %c0_0 = arith.constant 0 : index
    %0 = vector.load %arg1[%c0, %c0_0] : memref<8x16xf32, #tpu.memory_space<vmem>>, vector<8x16xf32>
    %c0_1 = arith.constant 0 : index
    %c0_2 = arith.constant 0 : index
    %1 = vector.load %arg3[%c0_1, %c0_2] : memref<16x32xf32, #tpu.memory_space<vmem>>, vector<16x32xf32>
    %cst = arith.constant dense<0.000000e+00> : vector<8x32xf32>
    %2 = tpu.matmul %0, %1, %cst {dimension_numbers = #tpu.dot_dimension_numbers<[1], [0], [0], [1], [0, 0, 1, 1], [], []>} : vector<8x16xf32>, vector<16x32xf32>, vector<8x32xf32> -> vector<8x32xf32>
    %c0_3 = arith.constant 0 : index
    %c0_4 = arith.constant 0 : index
    %3 = vector.load %arg2[%c0_3, %c0_4] : memref<8x8xf32, #tpu.memory_space<vmem>>, vector<8x8xf32>
    %c0_5 = arith.constant 0 : index
    %c0_6 = arith.constant 0 : index
    %4 = vector.load %arg4[%c0_5, %c0_6] : memref<8x32xf32, #tpu.memory_space<vmem>>, vector<8x32xf32>
    %cst_7 = arith.constant dense<0.000000e+00> : vector<8x32xf32>
    %5 = tpu.matmul %3, %4, %cst_7 {dimension_numbers = #tpu.dot_dimension_numbers<[1], [0], [0], [1], [0, 0, 1, 1], [], []>} : vector<8x8xf32>, vector<8x32xf32>, vector<8x32xf32> -> vector<8x32xf32>
    %6 = arith.addf %2, %5 : vector<8x32xf32>
    %c0_8 = arith.constant 0 : index
    %c0_9 = arith.constant 0 : index
    %7 = vector.load %arg5[%c0_8, %c0_9] : memref<1x32xf32, #tpu.memory_space<vmem>>, vector<1x32xf32>
    %8 = vector.broadcast %7 : vector<1x32xf32> to vector<8x32xf32>
    %9 = arith.addf %6, %8 : vector<8x32xf32>
    %cst_10 = arith.constant 0.000000e+00 : f32
    %10 = vector.broadcast %cst_10 : f32 to vector<8x32xf32>
    %11 = arith.maximumf %9, %10 : vector<8x32xf32>
    %c0_11 = arith.constant 0 : index
    %c0_12 = arith.constant 0 : index
    %12 = vector.load %arg6[%c0_11, %c0_12] : memref<32x32xf32, #tpu.memory_space<vmem>>, vector<32x32xf32>
    %cst_13 = arith.constant dense<0.000000e+00> : vector<8x32xf32>
    %13 = tpu.matmul %11, %12, %cst_13 {dimension_numbers = #tpu.dot_dimension_numbers<[1], [0], [0], [1], [0, 0, 1, 1], [], []>} : vector<8x32xf32>, vector<32x32xf32>, vector<8x32xf32> -> vector<8x32xf32>
    %c0_14 = arith.constant 0 : index
    %c0_15 = arith.constant 0 : index
    %14 = vector.load %arg7[%c0_14, %c0_15] : memref<1x32xf32, #tpu.memory_space<vmem>>, vector<1x32xf32>
    %15 = vector.broadcast %14 : vector<1x32xf32> to vector<8x32xf32>
    %16 = arith.addf %13, %15 : vector<8x32xf32>
    %cst_16 = arith.constant 0.000000e+00 : f32
    %17 = vector.broadcast %cst_16 : f32 to vector<8x32xf32>
    %18 = arith.maximumf %16, %17 : vector<8x32xf32>
    %c0_17 = arith.constant 0 : index
    %c0_18 = arith.constant 0 : index
    %19 = vector.load %arg8[%c0_17, %c0_18] : memref<1x32xf32, #tpu.memory_space<vmem>>, vector<1x32xf32>
    %cst_19 = arith.constant dense<0.000000e+00> : vector<1x8xf32>
    %20 = tpu.matmul %19, %18, %cst_19 {dimension_numbers = #tpu.dot_dimension_numbers<[1], [1], [0], [0], [0, 0, 1, 0], [], []>} : vector<1x32xf32>, vector<8x32xf32>, vector<1x8xf32> -> vector<1x8xf32>
    %c0_20 = arith.constant 0 : index
    %21 = memref.load %arg9[%c0_20] : memref<1xf32, #tpu.memory_space<smem>>
    %22 = vector.broadcast %21 : f32 to vector<1x8xf32>
    %23 = arith.addf %20, %22 : vector<1x8xf32>
    %c0_21 = arith.constant 0 : index
    %c0_22 = arith.constant 0 : index
    %24 = vector.load %arg10[%c0_21, %c0_22] : memref<1x8xf32, #tpu.memory_space<vmem>>, vector<1x8xf32>
    tpu.vector_store %arg10[%c0_21, %c0_22], %23 {strides = array<i32>} : memref<1x8xf32, #tpu.memory_space<vmem>>, vector<1x8xf32>,
    return
  }
  func.func @transform_0(%arg0: i32) -> (i32, i32) {
    %c0_i32 = arith.constant 0 : i32
    %c0_i32_0 = arith.constant 0 : i32
    return %arg0, %c0_i32 : i32, i32
  }
  func.func @transform_1(%arg0: i32) -> (i32, i32) {
    %c0_i32 = arith.constant 0 : i32
    %c0_i32_0 = arith.constant 0 : i32
    return %arg0, %c0_i32 : i32, i32
  }
  func.func @transform_2(%arg0: i32) -> (i32, i32) {
    %c0_i32 = arith.constant 0 : i32
    %c0_i32_0 = arith.constant 0 : i32
    %c0_i32_1 = arith.constant 0 : i32
    return %c0_i32, %c0_i32_0 : i32, i32
  }
  func.func @transform_3(%arg0: i32) -> (i32, i32) {
    %c0_i32 = arith.constant 0 : i32
    %c0_i32_0 = arith.constant 0 : i32
    %c0_i32_1 = arith.constant 0 : i32
    return %c0_i32, %c0_i32_0 : i32, i32
  }
  func.func @transform_4(%arg0: i32) -> (i32, i32) {
    %c0_i32 = arith.constant 0 : i32
    %c0_i32_0 = arith.constant 0 : i32
    %c0_i32_1 = arith.constant 0 : i32
    return %c0_i32, %c0_i32_0 : i32, i32
  }
  func.func @transform_5(%arg0: i32) -> (i32, i32) {
    %c0_i32 = arith.constant 0 : i32
    %c0_i32_0 = arith.constant 0 : i32
    %c0_i32_1 = arith.constant 0 : i32
    return %c0_i32, %c0_i32_0 : i32, i32
  }
  func.func @transform_6(%arg0: i32) -> (i32, i32) {
    %c0_i32 = arith.constant 0 : i32
    %c0_i32_0 = arith.constant 0 : i32
    %c0_i32_1 = arith.constant 0 : i32
    return %c0_i32, %c0_i32_0 : i32, i32
  }
  func.func @transform_7(%arg0: i32) -> (i32, i32) {
    %c0_i32 = arith.constant 0 : i32
    %c0_i32_0 = arith.constant 0 : i32
    %c0_i32_1 = arith.constant 0 : i32
    return %c0_i32, %c0_i32_0 : i32, i32
  }
  func.func @transform_8(%arg0: i32) -> i32 {
    %c0_i32 = arith.constant 0 : i32
    %c0_i32_0 = arith.constant 0 : i32
    return %c0_i32 : i32
  }
  func.func @transform_9(%arg0: i32) -> (i32, i32) {
    %c0_i32 = arith.constant 0 : i32
    %c0_i32_0 = arith.constant 0 : i32
    return %c0_i32, %arg0 : i32, i32
  }
}

</mosaic_0001>

<llo_original>
// kernel: tpu_custom_call.1
$region0: #{tpu_custom_call.1}
  #allocation0 [shape = 'u32[]', space=smem, size = 0x4, offset = 0x4, fixed_abs, tag = 'smem constant byte address 0x4 - core index']
  #allocation1 [shape = 'u32[144,128]{1,0:T(1,128)}', space=vmem, size = 0x12000, scoped, tag = 'internal scratch']
  #allocation2 [shape = 'f32[1]{0:T(128)S(6)}', space=smem, size = 0x200, scoped, tag = 'scoped memory for tpu_custom_call.1']
  %s0 = inlined_call_operand.hbm [shape: f32[8,16], index: 0, kind: input, shape index: {}]
  %s1 = inlined_call_operand.hbm [shape: f32[8,8], index: 1, kind: input, shape index: {}]
  %s2 = inlined_call_operand.hbm [shape: f32[16,32], index: 2, kind: input, shape index: {}]
  %s3 = inlined_call_operand.hbm [shape: f32[8,32], index: 3, kind: input, shape index: {}]
  %s4 = inlined_call_operand.vmem [shape: f32[1,32], index: 4, kind: input, shape index: {}]
  %s5 = inlined_call_operand.hbm [shape: f32[32,32], index: 5, kind: input, shape index: {}]
  %s6 = inlined_call_operand.vmem [shape: f32[1,32], index: 6, kind: input, shape index: {}]
  %s7 = inlined_call_operand.vmem [shape: f32[1,32], index: 7, kind: input, shape index: {}]
  %s8 = inlined_call_operand.<no memory space> [shape: f32[1], index: 8, kind: input, shape index: {}]
  %s9 = inlined_call_operand.hbm [shape: f32[1,8], index: 9, kind: output, shape index: {}]
  %s10 = sld [smem:[#allocation0]]
  $region66: #{tpu_custom_call.1} parent=0
    _
  %s12 = ssub.s32 1, %s10
  %s13 = scalar_select 0, %s12, %s10
  %14 = sst [smem:[#allocation2]] %s8
  $region1: #{tpu_custom_call.1} parent=0
    #allocation3 [shape = 'u8[4096]{0}', space=vmem, size = 0x1000, scoped, tag = 'input window, operand 0, single buffered']
    #allocation4 [shape = 's32[1]{0}', space=sflag, size = 0x4, scoped, tag = 'scoped memory for tpu_custom_call.1']
    #allocation5 [shape = 's32[1]{0}', space=sflag, size = 0x4, scoped, tag = 'scoped memory for tpu_custom_call.1']
    #allocation6 [shape = 'u8[4096]{0}', space=vmem, size = 0x1000, scoped, tag = 'input window, operand 1, single buffered']
    #allocation7 [shape = 's32[1]{0}', space=sflag, size = 0x4, scoped, tag = 'scoped memory for tpu_custom_call.1']
    #allocation8 [shape = 'u8[8192]{0}', space=vmem, size = 0x2000, scoped, tag = 'input window, operand 2, single buffered']
    #allocation9 [shape = 'u8[4096]{0}', space=vmem, size = 0x1000, scoped, tag = 'input window, operand 3, single buffered']
    #allocation10 [shape = 's32[1]{0}', space=sflag, size = 0x4, scoped, tag = 'scoped memory for tpu_custom_call.1']
    #allocation11 [shape = 'u8[16384]{0}', space=vmem, size = 0x4000, scoped, tag = 'input window, operand 5, single buffered']
    #allocation12 [shape = 'u8[512]{0}', space=vmem, size = 0x400, scoped, tag = 'output window, operand 0, single buffered']
    %15 = vsyncpa [#allocation4], 0
    %16 = vsyncpa [#allocation7], 0
    %17 = vsyncpa [#allocation10], 0
    %18 = vsyncpa [#allocation5], 0
    // Predicated region
    $region2: #{tpu_custom_call.1} parent=1 // pred_check
      _
    $region3: #{tpu_custom_call.1} parent=1 // pred_check_branch
      %20 = sbr.rel (0) target = $region5
    $region4: #{tpu_custom_call.1} parent=1 // pred_region
      %s22 = ssub.s32 128, 128
      %23 = vsyncadd [#allocation4], %s22
      %s25 = sshll.u32 [#allocation3], 4
      %s26 = int_to_ptr.vmem [resolvable:$true] %s25
      %28 = dma.hbm_to_vmem [thread:$0]  %s0, 128, %s26, [#allocation4]
    $region5: #{tpu_custom_call.1} parent=1 // pred_fallthru
      _
    // Predicated region
    $region6: #{tpu_custom_call.1} parent=1 // pred_check
      _
    $region7: #{tpu_custom_call.1} parent=1 // pred_check_branch
      %30 = sbr.rel (0) target = $region9
    $region8: #{tpu_custom_call.1} parent=1 // pred_region
      %s32 = ssub.s32 128, 128
      %33 = vsyncadd [#allocation7], %s32
      %s35 = sshll.u32 [#allocation6], 4
      %s36 = int_to_ptr.vmem [resolvable:$true] %s35
      %38 = dma.hbm_to_vmem [thread:$0]  %s1, 128, %s36, [#allocation7]
    $region9: #{tpu_custom_call.1} parent=1 // pred_fallthru
      _
    // Predicated region
    $region10: #{tpu_custom_call.1} parent=1 // pred_check
      _
    $region11: #{tpu_custom_call.1} parent=1 // pred_check_branch
      %40 = sbr.rel (0) target = $region13
    $region12: #{tpu_custom_call.1} parent=1 // pred_region
      %s42 = ssub.s32 256, 256
      %43 = vsyncadd [#allocation7], %s42
      %s44 = sshll.u32 [#allocation8], 4
      %s45 = int_to_ptr.vmem [resolvable:$true] %s44
      %50 = dma.hbm_to_vmem [thread:$0]  %s2, 256, %s45, [#allocation7], 128, 128, 8
    $region13: #{tpu_custom_call.1} parent=1 // pred_fallthru
      _
    // Predicated region
    $region14: #{tpu_custom_call.1} parent=1 // pred_check
      _
    $region15: #{tpu_custom_call.1} parent=1 // pred_check_branch
      %52 = sbr.rel (0) target = $region17
    $region16: #{tpu_custom_call.1} parent=1 // pred_region
      %s54 = ssub.s32 128, 128
      %55 = vsyncadd [#allocation10], %s54
      %s57 = sshll.u32 [#allocation9], 4
      %s58 = int_to_ptr.vmem [resolvable:$true] %s57
      %60 = dma.hbm_to_vmem [thread:$0]  %s3, 128, %s58, [#allocation10]
    $region17: #{tpu_custom_call.1} parent=1 // pred_fallthru
      _
    // Predicated region
    $region18: #{tpu_custom_call.1} parent=1 // pred_check
      _
    $region19: #{tpu_custom_call.1} parent=1 // pred_check_branch
      %62 = sbr.rel (0) target = $region21
    $region20: #{tpu_custom_call.1} parent=1 // pred_region
      _
    $region21: #{tpu_custom_call.1} parent=1 // pred_fallthru
      _
    // Predicated region
    $region22: #{tpu_custom_call.1} parent=1 // pred_check
      _
    $region23: #{tpu_custom_call.1} parent=1 // pred_check_branch
      %64 = sbr.rel (0) target = $region25
    $region24: #{tpu_custom_call.1} parent=1 // pred_region
      %s66 = ssub.s32 512, 512
      %67 = vsyncadd [#allocation10], %s66
      %s68 = sshll.u32 [#allocation11], 4
      %s69 = int_to_ptr.vmem [resolvable:$true] %s68
      %74 = dma.hbm_to_vmem [thread:$0]  %s5, 512, %s69, [#allocation10], 128, 128, 8
    $region25: #{tpu_custom_call.1} parent=1 // pred_fallthru
      _
    // Predicated region
    $region26: #{tpu_custom_call.1} parent=1 // pred_check
      _
    $region27: #{tpu_custom_call.1} parent=1 // pred_check_branch
      %76 = sbr.rel (0) target = $region29
    $region28: #{tpu_custom_call.1} parent=1 // pred_region
      _
    $region29: #{tpu_custom_call.1} parent=1 // pred_fallthru
      _
    // Predicated region
    $region30: #{tpu_custom_call.1} parent=1 // pred_check
      _
    $region31: #{tpu_custom_call.1} parent=1 // pred_check_branch
      %78 = sbr.rel (0) target = $region33
    $region32: #{tpu_custom_call.1} parent=1 // pred_region
      _
    $region33: #{tpu_custom_call.1} parent=1 // pred_fallthru
      _
    // Predicated region
    $region34: #{tpu_custom_call.1} parent=1 // pred_check
      _
    $region35: #{tpu_custom_call.1} parent=1 // pred_check_branch
      %80 = sbr.rel (0) target = $region37
    $region36: #{tpu_custom_call.1} parent=1 // pred_region
      _
    $region37: #{tpu_custom_call.1} parent=1 // pred_fallthru
      _
    // Predicated region
    $region38: #{tpu_custom_call.1} parent=1 // pred_check
      _
    $region39: #{tpu_custom_call.1} parent=1 // pred_check_branch
      %82 = sbr.rel (0) target = $region41
    $region40: #{tpu_custom_call.1} parent=1 // pred_region
      %83 = dma.done [#allocation4], 128
    $region41: #{tpu_custom_call.1} parent=1 // pred_fallthru
      _
    // Predicated region
    $region42: #{tpu_custom_call.1} parent=1 // pred_check
      _
    $region43: #{tpu_custom_call.1} parent=1 // pred_check_branch
      %85 = sbr.rel (0) target = $region45
    $region44: #{tpu_custom_call.1} parent=1 // pred_region
      %86 = dma.done [#allocation7], 128
    $region45: #{tpu_custom_call.1} parent=1 // pred_fallthru
      _
    // Predicated region
    $region46: #{tpu_custom_call.1} parent=1 // pred_check
      _
    $region47: #{tpu_custom_call.1} parent=1 // pred_check_branch
      %88 = sbr.rel (0) target = $region49
    $region48: #{tpu_custom_call.1} parent=1 // pred_region
      %89 = dma.done [#allocation7], 256
    $region49: #{tpu_custom_call.1} parent=1 // pred_fallthru
      _
    // Predicated region
    $region50: #{tpu_custom_call.1} parent=1 // pred_check
      _
    $region51: #{tpu_custom_call.1} parent=1 // pred_check_branch
      %91 = sbr.rel (0) target = $region53
    $region52: #{tpu_custom_call.1} parent=1 // pred_region
      %92 = dma.done [#allocation10], 128
    $region53: #{tpu_custom_call.1} parent=1 // pred_fallthru
      _
    // Predicated region
    $region54: #{tpu_custom_call.1} parent=1 // pred_check
      _
    $region55: #{tpu_custom_call.1} parent=1 // pred_check_branch
      %94 = sbr.rel (0) target = $region57
    $region56: #{tpu_custom_call.1} parent=1 // pred_region
      %95 = dma.done [#allocation10], 512
    $region57: #{tpu_custom_call.1} parent=1 // pred_fallthru
      _
    %v96 = vld [vmem:[#allocation3] sm:$0xff]
    %v97 = vld [vmem:[#allocation8] sm:$0xff]
    %v98 = vld [vmem:[#allocation8 + $0x8] sm:$0xff]
    %v99 = vld [vmem:[#allocation6] sm:$0xff]
    %v100 = vld [vmem:[#allocation9] sm:$0xff]
    %vm101 = vcmask 64512
    %v103 = vsel %vm101, %v99, 0
    %105 = vmatprep.subr.mxu0 0.0
    %106 = vmatpush1.msra.mxu0 0.0
    %107 = vmatprep.subr.mxu0 0.0
    %108 = vmatpush1.msra.mxu0 0.0
    %109 = vmatprep.subr.mxu0 0.0
    %110 = vmatpush1.msra.mxu0 0.0
    %111 = vmatprep.subr.mxu0 0.0
    %112 = vmatpush1.msra.mxu0 0.0
    %113 = vmatprep.subr.mxu0 0.0
    %114 = vmatpush1.msra.mxu0 0.0
    %115 = vmatprep.subr.mxu0 0.0
    %116 = vmatpush1.msra.mxu0 0.0
    %117 = vmatprep.subr.mxu0 0.0
    %118 = vmatpush1.msra.mxu0 0.0
    %119 = vmatprep.subr.mxu0 0.0
    %120 = vmatpush1.msra.mxu0 0.0
    %121 = vmatprep.subr.mxu0 0.0
    %122 = vmatpush1.msra.mxu0 0.0
    %123 = vmatprep.subr.mxu0 0.0
    %124 = vmatpush1.msra.mxu0 0.0
    %125 = vmatprep.subr.mxu0 0.0
    %126 = vmatpush1.msra.mxu0 0.0
    %127 = vmatprep.subr.mxu0 0.0
    %128 = vmatpush1.msra.mxu0 0.0
    %129 = vmatprep.subr.mxu0 0.0
    %130 = vmatpush1.msra.mxu0 0.0
    %131 = vmatprep.subr.mxu0 0.0
    %132 = vmatpush1.msra.mxu0 0.0
    %133 = vmatprep.subr.mxu0 0.0
    %134 = vmatpush1.msra.mxu0 0.0
    %135 = vmatprep.subr.mxu0 0.0
    %136 = vmatpush1.msra.mxu0 %v100
    %137 = vmatprep.subr.mxu0 0.0
    %138 = vmatpush2.msra.mxu0 0.0
    %139 = vmatprep.subr.mxu0 0.0
    %140 = vmatpush2.msra.mxu0 0.0
    %141 = vmatprep.subr.mxu0 0.0
    %142 = vmatpush2.msra.mxu0 0.0
    %143 = vmatprep.subr.mxu0 0.0
    %144 = vmatpush2.msra.mxu0 0.0
    %145 = vmatprep.subr.mxu0 0.0
    %146 = vmatpush2.msra.mxu0 0.0
    %147 = vmatprep.subr.mxu0 0.0
    %148 = vmatpush2.msra.mxu0 0.0
    %149 = vmatprep.subr.mxu0 0.0
    %150 = vmatpush2.msra.mxu0 0.0
    %151 = vmatprep.subr.mxu0 0.0
    %152 = vmatpush2.msra.mxu0 0.0
    %153 = vmatprep.subr.mxu0 0.0
    %154 = vmatpush2.msra.mxu0 0.0
    %155 = vmatprep.subr.mxu0 0.0
    %156 = vmatpush2.msra.mxu0 0.0
    %157 = vmatprep.subr.mxu0 0.0
    %158 = vmatpush2.msra.mxu0 0.0
    %159 = vmatprep.subr.mxu0 0.0
    %160 = vmatpush2.msra.mxu0 0.0
    %161 = vmatprep.subr.mxu0 0.0
    %162 = vmatpush2.msra.mxu0 0.0
    %163 = vmatprep.subr.mxu0 0.0
    %164 = vmatpush2.msra.mxu0 0.0
    %165 = vmatprep.subr.mxu0 0.0
    %166 = vmatpush2.msra.mxu0 0.0
    %167 = vmatprep.subr.mxu0 0.0
    %168 = vmatpush2.msra.mxu0 0.0
    %169 = vmatprep.mubr.f32.mxu0 0.0
    %170 = vmatmul.mubr.f32.gmra.mxu0 %v103
    %v171 = vpop.f32.mrf.mxu0
    %v172 = vadd.f32 0.0, %v171
    %v173 = vpop.f32.mrf.mxu0
    %174 = vdwg.mxu0
    %vm175 = vcmask 130048
    %v177 = vsel %vm175, %v96, 0
    %179 = vmatprep.subr.mxu0 0.0
    %180 = vmatpush1.msra.mxu0 0.0
    %181 = vmatprep.subr.mxu0 0.0
    %182 = vmatpush1.msra.mxu0 0.0
    %183 = vmatprep.subr.mxu0 0.0
    %184 = vmatpush1.msra.mxu0 0.0
    %185 = vmatprep.subr.mxu0 0.0
    %186 = vmatpush1.msra.mxu0 0.0
    %187 = vmatprep.subr.mxu0 0.0
    %188 = vmatpush1.msra.mxu0 0.0
    %189 = vmatprep.subr.mxu0 0.0
    %190 = vmatpush1.msra.mxu0 0.0
    %191 = vmatprep.subr.mxu0 0.0
    %192 = vmatpush1.msra.mxu0 0.0
    %193 = vmatprep.subr.mxu0 0.0
    %194 = vmatpush1.msra.mxu0 0.0
    %195 = vmatprep.subr.mxu0 0.0
    %196 = vmatpush1.msra.mxu0 0.0
    %197 = vmatprep.subr.mxu0 0.0
    %198 = vmatpush1.msra.mxu0 0.0
    %199 = vmatprep.subr.mxu0 0.0
    %200 = vmatpush1.msra.mxu0 0.0
    %201 = vmatprep.subr.mxu0 0.0
    %202 = vmatpush1.msra.mxu0 0.0
    %203 = vmatprep.subr.mxu0 0.0
    %204 = vmatpush1.msra.mxu0 0.0
    %205 = vmatprep.subr.mxu0 0.0
    %206 = vmatpush1.msra.mxu0 0.0
    %207 = vmatprep.subr.mxu0 0.0
    %208 = vmatpush1.msra.mxu0 %v98
    %209 = vmatprep.subr.mxu0 0.0
    %210 = vmatpush1.msra.mxu0 %v97
    %211 = vmatprep.subr.mxu0 0.0
    %212 = vmatpush2.msra.mxu0 0.0
    %213 = vmatprep.subr.mxu0 0.0
    %214 = vmatpush2.msra.mxu0 0.0
    %215 = vmatprep.subr.mxu0 0.0
    %216 = vmatpush2.msra.mxu0 0.0
    %217 = vmatprep.subr.mxu0 0.0
    %218 = vmatpush2.msra.mxu0 0.0
    %219 = vmatprep.subr.mxu0 0.0
    %220 = vmatpush2.msra.mxu0 0.0
    %221 = vmatprep.subr.mxu0 0.0
    %222 = vmatpush2.msra.mxu0 0.0
    %223 = vmatprep.subr.mxu0 0.0
    %224 = vmatpush2.msra.mxu0 0.0
    %225 = vmatprep.subr.mxu0 0.0
    %226 = vmatpush2.msra.mxu0 0.0
    %227 = vmatprep.subr.mxu0 0.0
    %228 = vmatpush2.msra.mxu0 0.0
    %229 = vmatprep.subr.mxu0 0.0
    %230 = vmatpush2.msra.mxu0 0.0
    %231 = vmatprep.subr.mxu0 0.0
    %232 = vmatpush2.msra.mxu0 0.0
    %233 = vmatprep.subr.mxu0 0.0
    %234 = vmatpush2.msra.mxu0 0.0
    %235 = vmatprep.subr.mxu0 0.0
    %236 = vmatpush2.msra.mxu0 0.0
    %237 = vmatprep.subr.mxu0 0.0
    %238 = vmatpush2.msra.mxu0 0.0
    %239 = vmatprep.subr.mxu0 0.0
    %240 = vmatpush2.msra.mxu0 0.0
    %241 = vmatprep.subr.mxu0 0.0
    %242 = vmatpush2.msra.mxu0 0.0
    %243 = vmatprep.mubr.f32.mxu0 0.0
    %244 = vmatmul.mubr.f32.gmra.mxu0 %v177
    %v245 = vpop.f32.mrf.mxu0
    %v246 = vadd.f32 %v172, %v245
    %v247 = vpop.f32.mrf.mxu0
    %248 = vdwg.mxu0
    %v249 = vld [vmem:[%s4] sm:$0x1]
    %v251 = vlaneseq
    %v252 = vshrl.u32 %v251, 7
    %v253 = vsub.s32 0, %v252
    %v254 = vrot.slane %v249, %v253
    %v256 = vadd.f32 %v246, %v254
    %v257 = vmax.f32 %v256, 0.0
    %v258 = vld [vmem:[#allocation11] sm:$0xff]
    %v259 = vld [vmem:[#allocation11 + $0x8] sm:$0xff]
    %v260 = vld [vmem:[#allocation11 + $0x10] sm:$0xff]
    %v261 = vld [vmem:[#allocation11 + $0x18] sm:$0xff]
    %v262 = vld [vmem:[%s6] sm:$0x1]
    %v264 = vlaneseq
    %v265 = vshrl.u32 %v264, 7
    %v266 = vsub.s32 0, %v265
    %v267 = vrot.slane %v262, %v266
    %vm269 = vcmask 261120
    %v271 = vsel %vm269, %v257, 0
    %273 = vmatprep.subr.mxu0 0.0
    %274 = vmatpush1.msra.mxu0 0.0
    %275 = vmatprep.subr.mxu0 0.0
    %276 = vmatpush1.msra.mxu0 0.0
    %277 = vmatprep.subr.mxu0 0.0
    %278 = vmatpush1.msra.mxu0 0.0
    %279 = vmatprep.subr.mxu0 0.0
    %280 = vmatpush1.msra.mxu0 0.0
    %281 = vmatprep.subr.mxu0 0.0
    %282 = vmatpush1.msra.mxu0 0.0
    %283 = vmatprep.subr.mxu0 0.0
    %284 = vmatpush1.msra.mxu0 0.0
    %285 = vmatprep.subr.mxu0 0.0
    %286 = vmatpush1.msra.mxu0 0.0
    %287 = vmatprep.subr.mxu0 0.0
    %288 = vmatpush1.msra.mxu0 0.0
    %289 = vmatprep.subr.mxu0 0.0
    %290 = vmatpush1.msra.mxu0 0.0
    %291 = vmatprep.subr.mxu0 0.0
    %292 = vmatpush1.msra.mxu0 0.0
    %293 = vmatprep.subr.mxu0 0.0
    %294 = vmatpush1.msra.mxu0 0.0
    %295 = vmatprep.subr.mxu0 0.0
    %296 = vmatpush1.msra.mxu0 0.0
    %297 = vmatprep.subr.mxu0 0.0
    %298 = vmatpush1.msra.mxu0 %v261
    %299 = vmatprep.subr.mxu0 0.0
    %300 = vmatpush1.msra.mxu0 %v260
    %301 = vmatprep.subr.mxu0 0.0
    %302 = vmatpush1.msra.mxu0 %v259
    %303 = vmatprep.subr.mxu0 0.0
    %304 = vmatpush1.msra.mxu0 %v258
    %305 = vmatprep.subr.mxu0 0.0
    %306 = vmatpush2.msra.mxu0 0.0
    %307 = vmatprep.subr.mxu0 0.0
    %308 = vmatpush2.msra.mxu0 0.0
    %309 = vmatprep.subr.mxu0 0.0
    %310 = vmatpush2.msra.mxu0 0.0
    %311 = vmatprep.subr.mxu0 0.0
    %312 = vmatpush2.msra.mxu0 0.0
    %313 = vmatprep.subr.mxu0 0.0
    %314 = vmatpush2.msra.mxu0 0.0
    %315 = vmatprep.subr.mxu0 0.0
    %316 = vmatpush2.msra.mxu0 0.0
    %317 = vmatprep.subr.mxu0 0.0
    %318 = vmatpush2.msra.mxu0 0.0
    %319 = vmatprep.subr.mxu0 0.0
    %320 = vmatpush2.msra.mxu0 0.0
    %321 = vmatprep.subr.mxu0 0.0
    %322 = vmatpush2.msra.mxu0 0.0
    %323 = vmatprep.subr.mxu0 0.0
    %324 = vmatpush2.msra.mxu0 0.0
    %325 = vmatprep.subr.mxu0 0.0
    %326 = vmatpush2.msra.mxu0 0.0
    %327 = vmatprep.subr.mxu0 0.0
    %328 = vmatpush2.msra.mxu0 0.0
    %329 = vmatprep.subr.mxu0 0.0
    %330 = vmatpush2.msra.mxu0 0.0
    %331 = vmatprep.subr.mxu0 0.0
    %332 = vmatpush2.msra.mxu0 0.0
    %333 = vmatprep.subr.mxu0 0.0
    %334 = vmatpush2.msra.mxu0 0.0
    %335 = vmatprep.subr.mxu0 0.0
    %336 = vmatpush2.msra.mxu0 0.0
    %337 = vmatprep.mubr.f32.mxu0 0.0
    %338 = vmatmul.mubr.f32.gmra.mxu0 %v271
    %v339 = vpop.f32.mrf.mxu0
    %v340 = vadd.f32 %v267, %v339
    %v341 = vpop.f32.mrf.mxu0
    %342 = vdwg.mxu0
    %v343 = vmax.f32 %v340, 0.0
    %v344 = vld [vmem:[%s7] sm:$0x1]
    %s345 = sld [smem:[#allocation2]]
    %v346 = vstv %s345
    %v348 = vsel %vm269, %v344, 0
    %v351 = vsel %vm269, %v343, 0
    %353 = vmatprep.subr.mxu0 0.0
    %354 = vmatpush1.xpose.msra.mxu0 0.0
    %355 = vmatprep.subr.mxu0 0.0
    %356 = vmatpush1.xpose.msra.mxu0 0.0
    %357 = vmatprep.subr.mxu0 0.0
    %358 = vmatpush1.xpose.msra.mxu0 0.0
    %359 = vmatprep.subr.mxu0 0.0
    %360 = vmatpush1.xpose.msra.mxu0 0.0
    %361 = vmatprep.subr.mxu0 0.0
    %362 = vmatpush1.xpose.msra.mxu0 0.0
    %363 = vmatprep.subr.mxu0 0.0
    %364 = vmatpush1.xpose.msra.mxu0 0.0
    %365 = vmatprep.subr.mxu0 0.0
    %366 = vmatpush1.xpose.msra.mxu0 0.0
    %367 = vmatprep.subr.mxu0 0.0
    %368 = vmatpush1.xpose.msra.mxu0 0.0
    %369 = vmatprep.subr.mxu0 0.0
    %370 = vmatpush1.xpose.msra.mxu0 0.0
    %371 = vmatprep.subr.mxu0 0.0
    %372 = vmatpush1.xpose.msra.mxu0 0.0
    %373 = vmatprep.subr.mxu0 0.0
    %374 = vmatpush1.xpose.msra.mxu0 0.0
    %375 = vmatprep.subr.mxu0 0.0
    %376 = vmatpush1.xpose.msra.mxu0 0.0
    %377 = vmatprep.subr.mxu0 0.0
    %378 = vmatpush1.xpose.msra.mxu0 0.0
    %379 = vmatprep.subr.mxu0 0.0
    %380 = vmatpush1.xpose.msra.mxu0 0.0
    %381 = vmatprep.subr.mxu0 0.0
    %382 = vmatpush1.xpose.msra.mxu0 0.0
    %383 = vmatprep.subr.mxu0 0.0
    %384 = vmatpush1.xpose.msra.mxu0 %v351
    %385 = vmatprep.subr.mxu0 0.0
    %386 = vmatpush2.xpose.msra.mxu0 0.0
    %387 = vmatprep.subr.mxu0 0.0
    %388 = vmatpush2.xpose.msra.mxu0 0.0
    %389 = vmatprep.subr.mxu0 0.0
    %390 = vmatpush2.xpose.msra.mxu0 0.0
    %391 = vmatprep.subr.mxu0 0.0
    %392 = vmatpush2.xpose.msra.mxu0 0.0
    %393 = vmatprep.subr.mxu0 0.0
    %394 = vmatpush2.xpose.msra.mxu0 0.0
    %395 = vmatprep.subr.mxu0 0.0
    %396 = vmatpush2.xpose.msra.mxu0 0.0
    %397 = vmatprep.subr.mxu0 0.0
    %398 = vmatpush2.xpose.msra.mxu0 0.0
    %399 = vmatprep.subr.mxu0 0.0
    %400 = vmatpush2.xpose.msra.mxu0 0.0
    %401 = vmatprep.subr.mxu0 0.0
    %402 = vmatpush2.xpose.msra.mxu0 0.0
    %403 = vmatprep.subr.mxu0 0.0
    %404 = vmatpush2.xpose.msra.mxu0 0.0
    %405 = vmatprep.subr.mxu0 0.0
    %406 = vmatpush2.xpose.msra.mxu0 0.0
    %407 = vmatprep.subr.mxu0 0.0
    %408 = vmatpush2.xpose.msra.mxu0 0.0
    %409 = vmatprep.subr.mxu0 0.0
    %410 = vmatpush2.xpose.msra.mxu0 0.0
    %411 = vmatprep.subr.mxu0 0.0
    %412 = vmatpush2.xpose.msra.mxu0 0.0
    %413 = vmatprep.subr.mxu0 0.0
    %414 = vmatpush2.xpose.msra.mxu0 0.0
    %415 = vmatprep.subr.mxu0 0.0
    %416 = vmatpush2.xpose.msra.mxu0 0.0
    %417 = vmatprep.mubr.f32.mxu0 0.0
    %418 = vmatmul.mubr.f32.gmra.mxu0 %v348
    %v419 = vpop.f32.mrf.mxu0
    %v420 = vadd.f32 %v346, %v419
    %v421 = vpop.f32.mrf.mxu0
    %422 = vdwg.mxu0
    %vm423 = vcmask 57344
    %424 = vst.msk [vmem:[#allocation12] sm:$0x1] %vm423, %v420
    // Predicated region
    $region58: #{tpu_custom_call.1} parent=1 // pred_check
      _
    $region59: #{tpu_custom_call.1} parent=1 // pred_check_branch
      %426 = sbr.rel (0) target = $region61
    $region60: #{tpu_custom_call.1} parent=1 // pred_region
      %s428 = ssub.s32 16, 16
      %429 = vsyncadd [#allocation5], %s428
      %s431 = sshll.u32 [#allocation12], 4
      %s432 = int_to_ptr.vmem [resolvable:$true] %s431
      %434 = dma.vmem_to_hbm [thread:$0]  %s432, 16, %s9, [#allocation5]
    $region61: #{tpu_custom_call.1} parent=1 // pred_fallthru
      _
    // Predicated region
    $region62: #{tpu_custom_call.1} parent=1 // pred_check
      _
    $region63: #{tpu_custom_call.1} parent=1 // pred_check_branch
      %436 = sbr.rel (0) target = $region65
    $region64: #{tpu_custom_call.1} parent=1 // pred_region
      %437 = dma.done [#allocation5], 16
    $region65: #{tpu_custom_call.1} parent=1 // pred_fallthru
      _
    %438 = vsyncpa [#allocation4], 1
    %439 = vsyncpa [#allocation7], 1
    %440 = vsyncpa [#allocation10], 1
    %441 = vsyncpa [#allocation5], 1

</llo_original>
